<compile_context>
chip_gen: v6e
topology: v6e:2x2x1
jax: 0.10.0
libtpu: 0.0.40
codegen_flags: <defaults>
</compile_context>

<pallas_src>
import jax
import jax.numpy as jnp
from jax.experimental import pallas as pl
from jax.experimental.pallas import tpu as pltpu

# Hard-coded hyper-parameters of the PyTorch module.
KERNEL_SIZE = 39
STRIDE = 3
LIN_IN = 72                      # 71 conv outputs + 1 flatness feature
CONV_OUT = LIN_IN - 1            # 71
FREQ_BINS = STRIDE * (CONV_OUT - 1) + KERNEL_SIZE   # 249 (implied by Linear(72, 1))
C_PAD = 128                      # conv features (+ mean column) padded to a lane multiple


def _round_up(n, m):
    return ((n + m - 1) // m) * m


def confidence_kernel(x_ref, convmat_ref, bias_ref, linw_ref, out_ref):
    """One batch tile of TB rows.

    x_ref       (TB, 249) VMEM  input rows (partial last block handled by Pallas)
    convmat_ref (249,128) VMEM  col 0 = ones/249 (arith mean), cols 1..71 = conv taps
    bias_ref    (1, 128)  VMEM  conv bias on cols 1..71, zero elsewhere
    linw_ref    (1, 128)  VMEM  Linear weights on cols 1..71, zero elsewhere
    out_ref     (TB, 3)   VMEM  col0 = relu(conv)@w, col1 = mean(log x), col2 = mean(x)
    """
    x = x_ref[...].astype(jnp.float32)                                 # (TB, 249)

    # Geometric-mean path: EUP log + XLU lane reduce over the 249 valid bins.
    mean_log = jnp.sum(jnp.log(x), axis=-1, keepdims=True) * (1.0 / FREQ_BINS)

    # Conv1d + arithmetic mean fused into a single MXU matmul (K = 249).
    feat = jnp.dot(x, convmat_ref[...], preferred_element_type=jnp.float32)  # (TB,128)
    feat = jnp.maximum(feat + bias_ref[...], 0.0)   # ReLU; no-op on mean column (x > 0)

    arith = feat[:, 0:1]                                               # mean(x), lane 0
    # N=1 "matmul" on the VPU + XLU instead of the MXU (linw col 0 is zero).
    conv_logit = jnp.sum(feat * linw_ref[...], axis=-1, keepdims=True)  # (TB, 1)

    # Pack the three per-row scalars into one lane-packed (TB, 3) store
    # (single output DMA stream per grid step).
    lane = jax.lax.broadcasted_iota(jnp.int32, (x.shape[0], 3), 1)
    out_ref[...] = jnp.where(lane == 0, conv_logit,
                             jnp.where(lane == 1, mean_log, arith))


def _build_toeplitz(conv_w):
    """(249, 128): col 0 = 1/249 averaging weights, cols 1..71 = Conv1d taps.

    toe[i, t] = conv_w[i - stride*t] if 0 <= i - stride*t < k else 0.
    """
    i = jnp.arange(FREQ_BINS)[:, None]
    t = jnp.arange(CONV_OUT)[None, :]
    tap = i - STRIDE * t
    valid = (tap >= 0) & (tap < KERNEL_SIZE)
    toe = jnp.where(valid, conv_w[jnp.clip(tap, 0, KERNEL_SIZE - 1)], 0.0)   # (249, 71)
    mean_col = jnp.full((FREQ_BINS, 1), 1.0 / FREQ_BINS, jnp.float32)
    m = jnp.concatenate([mean_col, toe], axis=1)                             # (249, 72)
    return jnp.pad(m, ((0, 0), (0, C_PAD - LIN_IN))).astype(jnp.float32)     # (249, 128)


def confidence_classifier(x, conv_w, conv_b, lin_w, lin_b, *, max_tile=2048):
    """x: (B, FREQ_BINS) float32 or bfloat16, strictly positive. Returns (B,) float32."""
    B, F = x.shape
    assert F == FREQ_BINS, (F, FREQ_BINS)

    # Balanced batch tile: multiple of 8 sublanes, <= max_tile, worst-case
    # partial-block waste < TB rows (no full-Bp padding, no pad copy of x).
    num_tiles = pl.cdiv(B, max_tile)
    TB = _round_up(pl.cdiv(B, num_tiles), 8)
    grid = (pl.cdiv(B, TB),)

    convmat = _build_toeplitz(conv_w.astype(jnp.float32))                    # (249, 128)
    bias_row = jnp.zeros((1, C_PAD), jnp.float32).at[0, 1:LIN_IN].set(
        conv_b.astype(jnp.float32))
    linw_row = jnp.zeros((1, C_PAD), jnp.float32).at[0, 1:LIN_IN].set(
        lin_w[:CONV_OUT].astype(jnp.float32))

    stats = pl.pallas_call(
        confidence_kernel,
        grid=grid,
        in_specs=[
            # x streamed per tile, UNPADDED: last block dim == full array dim (249).
            # Tuning knob: pipeline_mode=pl.Buffered(3) to deepen the x pipeline.
            pl.BlockSpec((TB, FREQ_BINS), lambda i: (i, 0)),
            pl.BlockSpec((FREQ_BINS, C_PAD), lambda i: (0, 0)),   # Toeplitz: resident
            pl.BlockSpec((1, C_PAD), lambda i: (0, 0)),           # conv bias row
            pl.BlockSpec((1, C_PAD), lambda i: (0, 0)),           # linear weight row
        ],
        out_specs=pl.BlockSpec((TB, 3), lambda i: (i, 0)),
        out_shape=jax.ShapeDtypeStruct((B, 3), jnp.float32),
        compiler_params=pltpu.CompilerParams(
            dimension_semantics=("parallel",)),   # batch tiles shard on v7x megacore
        cost_estimate=pl.CostEstimate(
            flops=2 * B * FREQ_BINS * C_PAD + 2 * B * C_PAD,
            transcendentals=B * FREQ_BINS,
            bytes_accessed=(B * FREQ_BINS + FREQ_BINS * C_PAD + 2 * C_PAD + 3 * B) * 4,
        ),
    )(x, convmat, bias_row, linw_row)

    # Lane-dense scalar tail over (B,): exp / clip / divide / sigmoid (XLA fuses it).
    conv_logit = stats[:, 0]
    mean_log = stats[:, 1]
    arith = jnp.maximum(stats[:, 2], 1e-8)
    flatness = jnp.exp(mean_log) / arith
    logit = conv_logit + lin_w[CONV_OUT].astype(jnp.float32) * flatness + lin_b
    return jax.nn.sigmoid(logit)


def reference(x, conv_w, conv_b, lin_w, lin_b):
    """Pure-JAX replica of the PyTorch forward pass (f32, HIGHEST precision)."""
    x = x.astype(jnp.float32)
    geo = jnp.exp(jnp.mean(jnp.log(x), axis=-1, keepdims=True))
    arith = jnp.maximum(jnp.mean(x, axis=-1, keepdims=True), 1e-8)
    flatness = geo / arith
    conv = jax.lax.conv_general_dilated(
        x[:, None, :], conv_w[None, None, :],
        window_strides=(STRIDE,), padding="VALID",
        dimension_numbers=("NCH", "OIH", "NCH"),
        precision=jax.lax.Precision.HIGHEST)[:, 0] + conv_b
    conv = jax.nn.relu(conv)
    feat = jnp.concatenate([conv, flatness], axis=-1)
    logit = jnp.dot(feat, lin_w, precision=jax.lax.Precision.HIGHEST) + lin_b
    return jax.nn.sigmoid(logit)


if __name__ == "__main__":
    key = jax.random.PRNGKey(0)
    k_x, k_cw, k_cb, k_lw, k_lb = jax.random.split(key, 5)

    B = 2
    # Strictly positive input (CQT magnitudes) so log() is well defined.
    x = jax.random.uniform(k_x, (B, FREQ_BINS), jnp.float32, minval=0.01, maxval=1.0)

    # Deterministic parameter init (same shapes / rough scale as PyTorch defaults).
    cbound = 1.0 / (KERNEL_SIZE ** 0.5)
    lbound = 1.0 / (LIN_IN ** 0.5)
    conv_w = jax.random.uniform(k_cw, (KERNEL_SIZE,), jnp.float32, -cbound, cbound)
    conv_b = jax.random.uniform(k_cb, (), jnp.float32, -cbound, cbound)
    lin_w = jax.random.uniform(k_lw, (LIN_IN,), jnp.float32, -lbound, lbound)
    lin_b = jax.random.uniform(k_lb, (), jnp.float32, -lbound, lbound)

    out = jax.block_until_ready(confidence_classifier(x, conv_w, conv_b, lin_w, lin_b))
    ref = jax.block_until_ready(reference(x, conv_w, conv_b, lin_w, lin_b))

    assert out.shape == (B,), out.shape
    # Tolerance covers TPU default matmul precision on the MXU (f32 operands may run
    # as bf16 passes); the post-sigmoid error is bounded well below 1e-3 either way.
    assert jnp.allclose(out, ref, atol=1e-3, rtol=1e-3), (out, ref)
    print("KERNEL_OK")
</pallas_src>

<mosaic_0001>
module attributes {stable_mosaic.version = 11 : i64} {
  func.func @confidence_kernel(%arg0: i32, %arg1: memref<8x249xf32, #tpu.memory_space<vmem>>, %arg2: memref<249x128xf32, #tpu.memory_space<vmem>>, %arg3: memref<1x128xf32, #tpu.memory_space<vmem>>, %arg4: memref<1x128xf32, #tpu.memory_space<vmem>>, %arg5: memref<8x3xf32, #tpu.memory_space<vmem>>) attributes {dimension_semantics = [#tpu.dimension_semantics<parallel>], iteration_bounds = array<i64: 1>, scalar_prefetch = 0 : i64, scratch_operands = 0 : i64, tpu.core_type = #tpu.core_type<tc>, window_params = [{transform_indices = @transform_0, window_bounds = array<i64: 8, 249>}, {pipeline_mode = #tpu.pipeline_mode<synchronous>, transform_indices = @transform_1, window_bounds = array<i64: 249, 128>}, {pipeline_mode = #tpu.pipeline_mode<synchronous>, transform_indices = @transform_2, window_bounds = array<i64: 1, 128>}, {pipeline_mode = #tpu.pipeline_mode<synchronous>, transform_indices = @transform_3, window_bounds = array<i64: 1, 128>}, {transform_indices = @transform_4, window_bounds = array<i64: 8, 3>}]} {
    %c0 = arith.constant 0 : index
    %c0_0 = arith.constant 0 : index
    %0 = vector.load %arg1[%c0, %c0_0] : memref<8x249xf32, #tpu.memory_space<vmem>>, vector<8x249xf32>
    %1 = math.log %0 : vector<8x249xf32>
    %cst = arith.constant dense<0.000000e+00> : vector<8xf32>
    %2 = vector.multi_reduction <add>, %1, %cst [1] : vector<8x249xf32> to vector<8xf32>
    %3 = vector.shape_cast %2 : vector<8xf32> to vector<8x1xf32>
    %cst_1 = arith.constant 0.00401606411 : f32
    %4 = vector.broadcast %cst_1 : f32 to vector<8x1xf32>
    %5 = arith.mulf %3, %4 : vector<8x1xf32>
    %c0_2 = arith.constant 0 : index
    %c0_3 = arith.constant 0 : index
    %6 = vector.load %arg2[%c0_2, %c0_3] : memref<249x128xf32, #tpu.memory_space<vmem>>, vector<249x128xf32>
    %cst_4 = arith.constant dense<0.000000e+00> : vector<8x128xf32>
    %7 = tpu.matmul %0, %6, %cst_4 {dimension_numbers = #tpu.dot_dimension_numbers<[1], [0], [0], [1], [0, 0, 1, 1], [], []>} : vector<8x249xf32>, vector<249x128xf32>, vector<8x128xf32> -> vector<8x128xf32>
    %c0_5 = arith.constant 0 : index
    %c0_6 = arith.constant 0 : index
    %8 = vector.load %arg3[%c0_5, %c0_6] : memref<1x128xf32, #tpu.memory_space<vmem>>, vector<1x128xf32>
    %9 = vector.broadcast %8 : vector<1x128xf32> to vector<8x128xf32>
    %10 = arith.addf %7, %9 : vector<8x128xf32>
    %cst_7 = arith.constant 0.000000e+00 : f32
    %11 = vector.broadcast %cst_7 : f32 to vector<8x128xf32>
    %12 = arith.maximumf %10, %11 : vector<8x128xf32>
    %13 = vector.extract_strided_slice %12 {offsets = [0, 0], sizes = [8, 1], strides = [1, 1]} : vector<8x128xf32> to vector<8x1xf32>
    %c0_8 = arith.constant 0 : index
    %c0_9 = arith.constant 0 : index
    %14 = vector.load %arg4[%c0_8, %c0_9] : memref<1x128xf32, #tpu.memory_space<vmem>>, vector<1x128xf32>
    %15 = vector.broadcast %14 : vector<1x128xf32> to vector<8x128xf32>
    %16 = arith.mulf %12, %15 : vector<8x128xf32>
    %cst_10 = arith.constant dense<0.000000e+00> : vector<8xf32>
    %17 = vector.multi_reduction <add>, %16, %cst_10 [1] : vector<8x128xf32> to vector<8xf32>
    %18 = vector.shape_cast %17 : vector<8xf32> to vector<8x1xf32>
    %19 = tpu.iota {dimensions = array<i32: 1>} : vector<8x3xi32>
    %c0_i32 = arith.constant 0 : i32
    %20 = vector.broadcast %c0_i32 : i32 to vector<8x3xi32>
    %21 = arith.cmpi eq, %19, %20 : vector<8x3xi32>
    %c1_i32 = arith.constant 1 : i32
    %22 = vector.broadcast %c1_i32 : i32 to vector<8x3xi32>
    %23 = arith.cmpi eq, %19, %22 : vector<8x3xi32>
    %24 = vector.shape_cast %5 : vector<8x1xf32> to vector<8x1xf32>
    %25 = vector.broadcast %24 : vector<8x1xf32> to vector<8x3xf32>
    %26 = vector.shape_cast %13 : vector<8x1xf32> to vector<8x1xf32>
    %27 = vector.broadcast %26 : vector<8x1xf32> to vector<8x3xf32>
    %28 = arith.select %23, %25, %27 : vector<8x3xi1>, vector<8x3xf32>
    %29 = vector.shape_cast %18 : vector<8x1xf32> to vector<8x1xf32>
    %30 = vector.broadcast %29 : vector<8x1xf32> to vector<8x3xf32>
    %31 = arith.select %21, %30, %28 : vector<8x3xi1>, vector<8x3xf32>
    %c0_11 = arith.constant 0 : index
    %c0_12 = arith.constant 0 : index
    %32 = vector.load %arg5[%c0_11, %c0_12] : memref<8x3xf32, #tpu.memory_space<vmem>>, vector<8x3xf32>
    tpu.vector_store %arg5[%c0_11, %c0_12], %31 {strides = array<i32>} : memref<8x3xf32, #tpu.memory_space<vmem>>, vector<8x3xf32>,
    return
  }
  func.func @transform_0(%arg0: i32) -> (i32, i32) {
    %c0_i32 = arith.constant 0 : i32
    %c0_i32_0 = arith.constant 0 : i32
    return %arg0, %c0_i32 : i32, i32
  }
  func.func @transform_1(%arg0: i32) -> (i32, i32) {
    %c0_i32 = arith.constant 0 : i32
    %c0_i32_0 = arith.constant 0 : i32
    %c0_i32_1 = arith.constant 0 : i32
    return %c0_i32, %c0_i32_0 : i32, i32
  }
  func.func @transform_2(%arg0: i32) -> (i32, i32) {
    %c0_i32 = arith.constant 0 : i32
    %c0_i32_0 = arith.constant 0 : i32
    %c0_i32_1 = arith.constant 0 : i32
    return %c0_i32, %c0_i32_0 : i32, i32
  }
  func.func @transform_3(%arg0: i32) -> (i32, i32) {
    %c0_i32 = arith.constant 0 : i32
    %c0_i32_0 = arith.constant 0 : i32
    %c0_i32_1 = arith.constant 0 : i32
    return %c0_i32, %c0_i32_0 : i32, i32
  }
  func.func @transform_4(%arg0: i32) -> (i32, i32) {
    %c0_i32 = arith.constant 0 : i32
    %c0_i32_0 = arith.constant 0 : i32
    return %arg0, %c0_i32 : i32, i32
  }
}

</mosaic_0001>

<llo_original>
// kernel: tpu_custom_call.1
$region0: #{tpu_custom_call.1}
  #allocation0 [shape = 'u32[]', space=smem, size = 0x4, offset = 0x4, fixed_abs, tag = 'smem constant byte address 0x4 - core index']
  #allocation1 [shape = 'u32[144,128]{1,0:T(1,128)}', space=vmem, size = 0x12000, scoped, tag = 'internal scratch']
  %s0 = inlined_call_operand.hbm [shape: f32[2,249], index: 0, kind: input, shape index: {}]
  %s1 = inlined_call_operand.hbm [shape: f32[249,128], index: 1, kind: input, shape index: {}]
  %s2 = inlined_call_operand.vmem [shape: f32[1,128], index: 2, kind: input, shape index: {}]
  %s3 = inlined_call_operand.vmem [shape: f32[1,128], index: 3, kind: input, shape index: {}]
  %s4 = inlined_call_operand.hbm [shape: f32[2,3], index: 4, kind: output, shape index: {}]
  %s5 = sld [smem:[#allocation0]]
  $region34: #{tpu_custom_call.1} parent=0
    _
  %s7 = ssub.s32 1, %s5
  %s8 = scalar_select 0, %s7, %s5
  $region1: #{tpu_custom_call.1} parent=0
    #allocation2 [shape = 'u8[8192]{0}', space=vmem, size = 0x2000, scoped, tag = 'input window, operand 0, single buffered']
    #allocation3 [shape = 's32[1]{0}', space=sflag, size = 0x4, scoped, tag = 'scoped memory for tpu_custom_call.1']
    #allocation4 [shape = 's32[1]{0}', space=sflag, size = 0x4, scoped, tag = 'scoped memory for tpu_custom_call.1']
    #allocation5 [shape = 'u8[131072]{0}', space=vmem, size = 0x20000, scoped, tag = 'input window, operand 1, single buffered']
    #allocation6 [shape = 's32[1]{0}', space=sflag, size = 0x4, scoped, tag = 'scoped memory for tpu_custom_call.1']
    #allocation7 [shape = 'u8[4096]{0}', space=vmem, size = 0x1000, scoped, tag = 'output window, operand 0, single buffered']
    %9 = vsyncpa [#allocation3], 0
    %10 = vsyncpa [#allocation6], 0
    %11 = vsyncpa [#allocation4], 0
    // Predicated region
    $region2: #{tpu_custom_call.1} parent=1 // pred_check
      _
    $region3: #{tpu_custom_call.1} parent=1 // pred_check_branch
      %13 = sbr.rel (0) target = $region5
    $region4: #{tpu_custom_call.1} parent=1 // pred_region
      %s15 = ssub.s32 256, 64
      %16 = vsyncadd [#allocation3], %s15
      %s17 = sshll.u32 [#allocation2], 4
      %s18 = int_to_ptr.vmem [resolvable:$true] %s17
      %23 = dma.hbm_to_vmem [thread:$0]  %s0, 64, %s18, [#allocation3], 64, 64, 4
    $region5: #{tpu_custom_call.1} parent=1 // pred_fallthru
      _
    // Predicated region
    $region6: #{tpu_custom_call.1} parent=1 // pred_check
      _
    $region7: #{tpu_custom_call.1} parent=1 // pred_check_branch
      %25 = sbr.rel (0) target = $region9
    $region8: #{tpu_custom_call.1} parent=1 // pred_region
      %s27 = ssub.s32 4096, 4096
      %28 = vsyncadd [#allocation6], %s27
      %s29 = sshll.u32 [#allocation5], 4
      %s30 = int_to_ptr.vmem [resolvable:$true] %s29
      %35 = dma.hbm_to_vmem [thread:$0]  %s1, 4096, %s30, [#allocation6], 128, 128, 8
    $region9: #{tpu_custom_call.1} parent=1 // pred_fallthru
      _
    // Predicated region
    $region10: #{tpu_custom_call.1} parent=1 // pred_check
      _
    $region11: #{tpu_custom_call.1} parent=1 // pred_check_branch
      %37 = sbr.rel (0) target = $region13
    $region12: #{tpu_custom_call.1} parent=1 // pred_region
      _
    $region13: #{tpu_custom_call.1} parent=1 // pred_fallthru
      _
    // Predicated region
    $region14: #{tpu_custom_call.1} parent=1 // pred_check
      _
    $region15: #{tpu_custom_call.1} parent=1 // pred_check_branch
      %39 = sbr.rel (0) target = $region17
    $region16: #{tpu_custom_call.1} parent=1 // pred_region
      _
    $region17: #{tpu_custom_call.1} parent=1 // pred_fallthru
      _
    // Predicated region
    $region18: #{tpu_custom_call.1} parent=1 // pred_check
      _
    $region19: #{tpu_custom_call.1} parent=1 // pred_check_branch
      %41 = sbr.rel (0) target = $region21
    $region20: #{tpu_custom_call.1} parent=1 // pred_region
      %42 = dma.done [#allocation3], 256
    $region21: #{tpu_custom_call.1} parent=1 // pred_fallthru
      _
    // Predicated region
    $region22: #{tpu_custom_call.1} parent=1 // pred_check
      _
    $region23: #{tpu_custom_call.1} parent=1 // pred_check_branch
      %44 = sbr.rel (0) target = $region25
    $region24: #{tpu_custom_call.1} parent=1 // pred_region
      %45 = dma.done [#allocation6], 4096
    $region25: #{tpu_custom_call.1} parent=1 // pred_fallthru
      _
    %v46 = vld [vmem:[#allocation2] sm:$0xf]
    %v47 = vld [vmem:[#allocation2 + $0x4] sm:$0xf]
    %v48 = vld [vmem:[#allocation2 + $0x8] sm:$0xf]
    %v49 = vld [vmem:[#allocation2 + $0xc] sm:$0xf]
    %v50 = vlog2.pop %v46
    %v51 = vmul.f32 %v50, 0.6931472
    %v52 = vlog2.pop %v47
    %v53 = vmul.f32 %v52, 0.6931472
    %v54 = vlog2.pop %v48
    %v55 = vmul.f32 %v54, 0.6931472
    %v56 = vlog2.pop %v49
    %v57 = vmul.f32 %v56, 0.6931472
    %v62 = vcombine.low %v51, %v53
    %v63 = vcombine.low %v55, %v57
    %v65 = vunpack.c.l.s4 1983009808
    %v66 = vunpack.c.0.s8 %v65
    %v67 = vlaneseq
    %v68 = vshrl.u32 %v67, 7
    %v69 = vsub.s32 %v66, %v68
    %v70 = vrot.slane %v62, %v69
    %v72 = vunpack.c.l.s4 1983009808
    %v73 = vunpack.c.0.s8 %v72
    %v74 = vlaneseq
    %v75 = vshrl.u32 %v74, 7
    %v76 = vsub.s32 %v73, %v75
    %v77 = vrot.slane %v63, %v76
    %v78 = vcombine.low %v70, %v77
    %v79 = vcombine.high %v70, %v77
    %vm82 = vcmask 990208
    %v83 = vsel %vm82, %v79, 0.0
    %v84 = vadd.f32 %v78, %v83
    %85 = vadd.xlane.f32.xlu0 %v84
    %v86 = vpop.xlane.xlu0 %85
    %v87 = vmul.f32 %v86, 0.004016064
    %v88 = vld [vmem:[#allocation5] sm:$0xff]
    %v89 = vld [vmem:[#allocation5 + $0x8] sm:$0xff]
    %v90 = vld [vmem:[#allocation5 + $0x10] sm:$0xff]
    %v91 = vld [vmem:[#allocation5 + $0x18] sm:$0xff]
    %v92 = vld [vmem:[#allocation5 + $0x20] sm:$0xff]
    %v93 = vld [vmem:[#allocation5 + $0x28] sm:$0xff]
    %v94 = vld [vmem:[#allocation5 + $0x30] sm:$0xff]
    %v95 = vld [vmem:[#allocation5 + $0x38] sm:$0xff]
    %v96 = vld [vmem:[#allocation5 + $0x40] sm:$0xff]
    %v97 = vld [vmem:[#allocation5 + $0x48] sm:$0xff]
    %v98 = vld [vmem:[#allocation5 + $0x50] sm:$0xff]
    %v99 = vld [vmem:[#allocation5 + $0x58] sm:$0xff]
    %v100 = vld [vmem:[#allocation5 + $0x60] sm:$0xff]
    %v101 = vld [vmem:[#allocation5 + $0x68] sm:$0xff]
    %v102 = vld [vmem:[#allocation5 + $0x70] sm:$0xff]
    %v103 = vld [vmem:[#allocation5 + $0x78] sm:$0xff]
    %v104 = vld [vmem:[#allocation5 + $0x80] sm:$0xff]
    %v105 = vld [vmem:[#allocation5 + $0x88] sm:$0xff]
    %v106 = vld [vmem:[#allocation5 + $0x90] sm:$0xff]
    %v107 = vld [vmem:[#allocation5 + $0x98] sm:$0xff]
    %v108 = vld [vmem:[#allocation5 + $0xa0] sm:$0xff]
    %v109 = vld [vmem:[#allocation5 + $0xa8] sm:$0xff]
    %v110 = vld [vmem:[#allocation5 + $0xb0] sm:$0xff]
    %v111 = vld [vmem:[#allocation5 + $0xb8] sm:$0xff]
    %v112 = vld [vmem:[#allocation5 + $0xc0] sm:$0xff]
    %v113 = vld [vmem:[#allocation5 + $0xc8] sm:$0xff]
    %v114 = vld [vmem:[#allocation5 + $0xd0] sm:$0xff]
    %v115 = vld [vmem:[#allocation5 + $0xd8] sm:$0xff]
    %v116 = vld [vmem:[#allocation5 + $0xe0] sm:$0xff]
    %v117 = vld [vmem:[#allocation5 + $0xe8] sm:$0xff]
    %v118 = vld [vmem:[#allocation5 + $0xf0] sm:$0xff]
    %v119 = vld [vmem:[#allocation5 + $0xf8] sm:$0x1]
    %v120 = vld [vmem:[%s2] sm:$0x1]
    %v122 = vlaneseq
    %v123 = vshrl.u32 %v122, 7
    %v124 = vsub.s32 0, %v123
    %v125 = vrot.slane %v120, %v124
    %v131 = vcombine.low %v46, %v47
    %v132 = vcombine.low %v48, %v49
    %v134 = vunpack.c.l.s4 1983009808
    %v135 = vunpack.c.0.s8 %v134
    %v136 = vlaneseq
    %v137 = vshrl.u32 %v136, 7
    %v138 = vsub.s32 %v135, %v137
    %v139 = vrot.slane %v131, %v138
    %v141 = vunpack.c.l.s4 1983009808
    %v142 = vunpack.c.0.s8 %v141
    %v143 = vlaneseq
    %v144 = vshrl.u32 %v143, 7
    %v145 = vsub.s32 %v142, %v144
    %v146 = vrot.slane %v132, %v145
    %v147 = vcombine.low %v139, %v146
    %v148 = vcombine.high %v139, %v146
    %v150 = vsel %vm82, %v148, 0
    %vm152 = vcmask 1040384
    %v154 = vsel %vm152, %v119, 0
    %156 = vmatprep.subr.mxu0 0.0
    %157 = vmatpush1.msra.mxu0 %v103
    %158 = vmatprep.subr.mxu0 0.0
    %159 = vmatpush1.msra.mxu0 %v102
    %160 = vmatprep.subr.mxu0 0.0
    %161 = vmatpush1.msra.mxu0 %v101
    %162 = vmatprep.subr.mxu0 0.0
    %163 = vmatpush1.msra.mxu0 %v100
    %164 = vmatprep.subr.mxu0 0.0
    %165 = vmatpush1.msra.mxu0 %v99
    %166 = vmatprep.subr.mxu0 0.0
    %167 = vmatpush1.msra.mxu0 %v98
    %168 = vmatprep.subr.mxu0 0.0
    %169 = vmatpush1.msra.mxu0 %v97
    %170 = vmatprep.subr.mxu0 0.0
    %171 = vmatpush1.msra.mxu0 %v96
    %172 = vmatprep.subr.mxu0 0.0
    %173 = vmatpush1.msra.mxu0 %v95
    %174 = vmatprep.subr.mxu0 0.0
    %175 = vmatpush1.msra.mxu0 %v94
    %176 = vmatprep.subr.mxu0 0.0
    %177 = vmatpush1.msra.mxu0 %v93
    %178 = vmatprep.subr.mxu0 0.0
    %179 = vmatpush1.msra.mxu0 %v92
    %180 = vmatprep.subr.mxu0 0.0
    %181 = vmatpush1.msra.mxu0 %v91
    %182 = vmatprep.subr.mxu0 0.0
    %183 = vmatpush1.msra.mxu0 %v90
    %184 = vmatprep.subr.mxu0 0.0
    %185 = vmatpush1.msra.mxu0 %v89
    %186 = vmatprep.subr.mxu0 0.0
    %187 = vmatpush1.msra.mxu0 %v88
    %188 = vmatprep.subr.mxu0 0.0
    %189 = vmatpush2.msra.mxu0 %v154
    %190 = vmatprep.subr.mxu0 0.0
    %191 = vmatpush2.msra.mxu0 %v118
    %192 = vmatprep.subr.mxu0 0.0
    %193 = vmatpush2.msra.mxu0 %v117
    %194 = vmatprep.subr.mxu0 0.0
    %195 = vmatpush2.msra.mxu0 %v116
    %196 = vmatprep.subr.mxu0 0.0
    %197 = vmatpush2.msra.mxu0 %v115
    %198 = vmatprep.subr.mxu0 0.0
    %199 = vmatpush2.msra.mxu0 %v114
    %200 = vmatprep.subr.mxu0 0.0
    %201 = vmatpush2.msra.mxu0 %v113
    %202 = vmatprep.subr.mxu0 0.0
    %203 = vmatpush2.msra.mxu0 %v112
    %204 = vmatprep.subr.mxu0 0.0
    %205 = vmatpush2.msra.mxu0 %v111
    %206 = vmatprep.subr.mxu0 0.0
    %207 = vmatpush2.msra.mxu0 %v110
    %208 = vmatprep.subr.mxu0 0.0
    %209 = vmatpush2.msra.mxu0 %v109
    %210 = vmatprep.subr.mxu0 0.0
    %211 = vmatpush2.msra.mxu0 %v108
    %212 = vmatprep.subr.mxu0 0.0
    %213 = vmatpush2.msra.mxu0 %v107
    %214 = vmatprep.subr.mxu0 0.0
    %215 = vmatpush2.msra.mxu0 %v106
    %216 = vmatprep.subr.mxu0 0.0
    %217 = vmatpush2.msra.mxu0 %v105
    %218 = vmatprep.subr.mxu0 0.0
    %219 = vmatpush2.msra.mxu0 %v104
    %220 = vmatprep.mubr.f32.mxu0 %v150
    %221 = vmatmul.mubr.f32.gmra.mxu0 %v147
    %v222 = vpop.f32.mrf.mxu0
    %v223 = vadd.f32 %v125, %v222
    %v224 = vpop.f32.mrf.mxu0
    %225 = vdwg.mxu0
    %v226 = vmax.f32 %v223, 0.0
    %v227 = vld [vmem:[%s3] sm:$0x1]
    %v229 = vlaneseq
    %v230 = vshrl.u32 %v229, 7
    %v231 = vsub.s32 0, %v230
    %v232 = vrot.slane %v227, %v231
    %v234 = vmul.f32 %v226, %v232
    %235 = vadd.xlane.f32.xlu0 %v234
    %v236 = vpop.xlane.xlu0 %235
    %v237 = vlaneseq
    %v238 = vand.u32 %v237, 127
    %vm239 = vcmp.eq.s32.totalorder %v238, 0
    %vm240 = vcmp.eq.s32.totalorder %v238, 1
    %242 = vset.pattern.permute.xlu0 0
    %243 = vperm.xlu0 %242, %v226
    %v244 = vpop.permute.xlu0 %243
    %v246 = vsel %vm240, %v87, %v244
    %v247 = vsel %vm239, %v236, %v246
    %vm248 = vcmask 23552
    %249 = vst.msk [vmem:[#allocation7] sm:$0xff] %vm248, %v247
    // Predicated region
    $region26: #{tpu_custom_call.1} parent=1 // pred_check
      _
    $region27: #{tpu_custom_call.1} parent=1 // pred_check_branch
      %251 = sbr.rel (0) target = $region29
    $region28: #{tpu_custom_call.1} parent=1 // pred_region
      %s253 = ssub.s32 128, 32
      %254 = vsyncadd [#allocation4], %s253
      %s255 = sshll.u32 [#allocation7], 4
      %s256 = int_to_ptr.vmem [resolvable:$true] %s255
      %261 = dma.vmem_to_hbm [thread:$0]  %s256, 32, %s4, [#allocation4], 32, 32, 2
    $region29: #{tpu_custom_call.1} parent=1 // pred_fallthru
      _
    // Predicated region
    $region30: #{tpu_custom_call.1} parent=1 // pred_check
      _
    $region31: #{tpu_custom_call.1} parent=1 // pred_check_branch
      %263 = sbr.rel (0) target = $region33
    $region32: #{tpu_custom_call.1} parent=1 // pred_region
      %264 = dma.done [#allocation4], 128
    $region33: #{tpu_custom_call.1} parent=1 // pred_fallthru
      _
    %265 = vsyncpa [#allocation3], 1
    %266 = vsyncpa [#allocation6], 1
    %267 = vsyncpa [#allocation4], 1

</llo_original>
